<compile_context>
chip_gen: v7x
topology: tpu7x:2x2x1
jax: 0.10.0
libtpu: 0.0.40
codegen_flags: <defaults>
</compile_context>

<pallas_src>
import functools

import jax
import jax.numpy as jnp
from jax import lax
from jax.experimental import pallas as pl
from jax.experimental.pallas import tpu as pltpu


def _cdiv(a, b):
    return -(-a // b)


def _fill_im2col(s_ref, val, k, pad, col0):
    """Write-side im2col.

    Column group t of `s_ref` (bt, L, >= col0 + k*c) receives `val` (bt, L, c)
    shifted by (t - pad) along the length axis with zero padding.  Every store
    spans the full sublane (L) range, so there are no halo rows to re-zero and
    no sublane-masked partial stores; each dot then reads the scratch back with
    a single reshape.
    """
    bt, l, c = val.shape
    for t in range(k):
        d = t - pad                               # this tap reads x[j + d]
        if d == 0:
            shifted = val
        elif d < 0:                               # left zero-pad of |d| rows
            shifted = jnp.concatenate(
                [jnp.zeros((bt, -d, c), val.dtype), val[:, :l + d, :]], axis=1)
        else:                                     # right zero-pad of d rows
            shifted = jnp.concatenate(
                [val[:, d:, :], jnp.zeros((bt, d, c), val.dtype)], axis=1)
        s_ref[:, :, col0 + t * c: col0 + (t + 1) * c] = shifted


def inception_a_kernel(x_ref, w1_ref, bias1_ref, wmid_ref, w3c_ref, bias2_ref,
                       out_ref, xs_ref, smid_ref, s3c_ref):
    """One grid step: btile samples, NLC in -> NLC out (88 channels), 3 matmuls."""
    bt, l, cin = x_ref.shape
    cdt = xs_ref.dtype
    rows = bt * l

    # ---- stage 1: fused branch entries + folded pool branch (one matmul) -------
    _fill_im2col(xs_ref, x_ref[...], 3, 1, 0)
    h1 = jnp.dot(xs_ref[...].reshape(rows, 3 * cin), w1_ref[...],
                 preferred_element_type=jnp.float32) + bias1_ref[...]
    # h1 columns: [branch1x1 0:16 | y5 16:32 | y3a 32:48 | branch_pool 48:72]

    # ---- mid stage: branch5x5_2 (k=5) and branch3x3_2 (k=3) fused, K = 128 -----
    _fill_im2col(smid_ref, h1[:, 16:32].reshape(bt, l, 16).astype(cdt), 5, 2, 0)
    _fill_im2col(smid_ref, h1[:, 32:48].reshape(bt, l, 16).astype(cdt), 3, 1, 80)
    hm = jnp.dot(smid_ref[...].reshape(rows, 128), wmid_ref[...],
                 preferred_element_type=jnp.float32) + bias2_ref[:, 0:48]
    # hm columns: [branch5x5 0:24 | y3b 24:48]

    # ---- branch3x3_3 (k=3 on y3b) ----------------------------------------------
    _fill_im2col(s3c_ref, hm[:, 24:48].reshape(bt, l, 24).astype(cdt), 3, 1, 0)
    b3 = jnp.dot(s3c_ref[...].reshape(rows, 72), w3c_ref[...],
                 preferred_element_type=jnp.float32) + bias2_ref[:, 48:72]

    # ---- channel concat + single slab store (NLC) -------------------------------
    res = jnp.concatenate([h1[:, 0:16], hm[:, 0:24], b3, h1[:, 48:72]], axis=1)
    out_ref[...] = res.reshape(bt, l, 88)


def _tapmat(w):
    """Torch Conv1d weight (Cout, Cin, K) -> im2col weight (K*Cin, Cout), tap-major rows."""
    cout, cin, k = w.shape
    return jnp.transpose(w, (2, 1, 0)).reshape(k * cin, cout).astype(jnp.float32)


def _plan_btile(n, l, cin, compute_bytes, target_rows=512, vmem_budget=40 * 2**20):
    """Samples folded per grid step.

    Aim for M = btile*L >= target_rows (amortize per-step overhead / fill the
    MXU M dim), keep >= 2 grid steps when N >= 2 (both v7x TensorCores get
    work), and stay under a per-core VMEM budget (v7x: 64 MiB/TC).
    """
    bt = max(1, _cdiv(target_rows, l))
    if n >= 2:
        bt = min(bt, _cdiv(n, 2))
    bt = max(1, min(bt, n))

    def footprint(b):
        rows = b * l
        io = 2 * rows * cin * compute_bytes + 2 * rows * 88 * 4   # double-buffered blocks
        scratch = rows * (3 * cin + 128 + 72) * compute_bytes     # im2col scratches
        return io + scratch

    while bt > 1 and footprint(bt) > vmem_budget:
        bt -= 1
    return bt, footprint(bt)


@functools.partial(jax.jit, static_argnames=("compute_dtype",))
def inception_a_forward(x_ncl, params, compute_dtype=jnp.bfloat16):
    """x_ncl: (N, Cin, L) float32 -> (N, 88, L) float32 (PyTorch NCL layout)."""
    n, cin, l = x_ncl.shape
    compute_bytes = jnp.dtype(compute_dtype).itemsize
    btile, vmem_est = _plan_btile(n, l, cin, compute_bytes)
    n_pad = _cdiv(n, btile) * btile

    # ---- pack the 14 torch tensors into 3 weight slabs + 2 bias rows ------------
    w1m, w51m, w31m = _tapmat(params["w1"]), _tapmat(params["w51"]), _tapmat(params["w31"])
    wpm = _tapmat(params["wp"]) / 3.0          # avg_pool3 folded into a 3-tap conv
    edge = jnp.concatenate([jnp.zeros((cin, 48), jnp.float32), wpm], axis=1)
    center = jnp.concatenate([w1m, w51m, w31m, wpm], axis=1)
    w_stage1 = jnp.concatenate([edge, center, edge], axis=0).astype(compute_dtype)  # (3cin,72)
    bias1 = jnp.concatenate([params["b1"], params["b51"], params["b31"],
                             params["bp"]]).reshape(1, 72).astype(jnp.float32)

    w_mid = jnp.zeros((128, 48), jnp.float32)                       # block-diagonal
    w_mid = w_mid.at[0:80, 0:24].set(_tapmat(params["w52"]))        # 5-tap, y5 -> b5
    w_mid = w_mid.at[80:128, 24:48].set(_tapmat(params["w32"]))     # 3-tap, y3a -> y3b
    w_mid = w_mid.astype(compute_dtype)
    w3c = _tapmat(params["w33"]).astype(compute_dtype)              # (72, 24)
    bias2 = jnp.concatenate([params["b52"], params["b32"],
                             params["b33"]]).reshape(1, 72).astype(jnp.float32)

    # ---- wrapper-side layout plumbing: NCL -> NLC, pad batch to a btile multiple -
    x_nlc = jnp.transpose(x_ncl, (0, 2, 1)).astype(compute_dtype)
    if n_pad != n:
        x_nlc = jnp.pad(x_nlc, ((0, n_pad - n), (0, 0), (0, 0)))

    weight_args = [w_stage1, bias1, w_mid, w3c, bias2]

    def const_spec(a):
        return pl.BlockSpec(a.shape, lambda i, _nd=a.ndim: (0,) * _nd)

    out_nlc = pl.pallas_call(
        inception_a_kernel,
        out_shape=jax.ShapeDtypeStruct((n_pad, l, 88), jnp.float32),
        grid=(n_pad // btile,),
        in_specs=[pl.BlockSpec((btile, l, cin), lambda i: (i, 0, 0))]
        + [const_spec(a) for a in weight_args],
        out_specs=pl.BlockSpec((btile, l, 88), lambda i: (i, 0, 0)),
        scratch_shapes=[
            pltpu.VMEM((btile, l, 3 * cin), compute_dtype),   # stage-1 im2col
            pltpu.VMEM((btile, l, 128), compute_dtype),       # fused 5x5_2 + 3x3_2 im2col
            pltpu.VMEM((btile, l, 72), compute_dtype),        # 3x3_3 im2col
        ],
        compiler_params=pltpu.CompilerParams(
            dimension_semantics=("parallel",),
            # v7x has 64 MiB VMEM/TC -> keep the scoped limit <= ~48 MiB;
            # v5e/v6e (128 MiB physical) are unaffected by this cap.
            vmem_limit_bytes=int(min(48 * 2**20, max(32 * 2**20, 4 * vmem_est)))),
    )(x_nlc, *weight_args)

    # NLC -> NCL (single XLA transpose) and drop the batch padding.
    return jnp.transpose(out_nlc, (0, 2, 1))[:n]


# ---------------- pure-JAX reference (for correctness check) -------------------
def _ref_conv1d(x, w, b, pad):
    y = lax.conv_general_dilated(x, w, (1,), [(pad, pad)],
                                 dimension_numbers=("NCH", "OIH", "NCH"))
    return y + b[None, :, None]


def _ref_forward(x, p):
    b1 = _ref_conv1d(x, p["w1"], p["b1"], 0)          # cropped-to-L semantics (see TODO)
    b5 = _ref_conv1d(x, p["w51"], p["b51"], 0)
    b5 = _ref_conv1d(b5, p["w52"], p["b52"], 2)
    b3 = _ref_conv1d(x, p["w31"], p["b31"], 0)
    b3 = _ref_conv1d(b3, p["w32"], p["b32"], 1)
    b3 = _ref_conv1d(b3, p["w33"], p["b33"], 1)
    pooled = lax.reduce_window(x, 0.0, lax.add, (1, 1, 3), (1, 1, 1),
                               [(0, 0), (0, 0), (1, 1)]) / 3.0
    bp = _ref_conv1d(pooled, p["wp"], p["bp"], 0)
    return jnp.concatenate([b1, b5, b3, bp], axis=1)


def _init_params(key, in_channels):
    shapes = {
        "w1": (16, in_channels, 1), "b1": (16,),
        "w51": (16, in_channels, 1), "b51": (16,),
        "w52": (24, 16, 5), "b52": (24,),
        "w31": (16, in_channels, 1), "b31": (16,),
        "w32": (24, 16, 3), "b32": (24,),
        "w33": (24, 24, 3), "b33": (24,),
        "wp": (24, in_channels, 1), "bp": (24,),
    }
    params = {}
    keys = jax.random.split(key, len(shapes))
    for k_rng, (name, shp) in zip(keys, sorted(shapes.items())):
        if name.startswith("w"):
            fan_in = shp[1] * shp[2]
        else:
            fan_in = max(shp[0], 1)
        bound = 1.0 / jnp.sqrt(jnp.float32(fan_in))
        params[name] = jax.random.uniform(k_rng, shp, jnp.float32, -bound, bound)
    return params


if __name__ == "__main__":
    key = jax.random.PRNGKey(0)
    k_x, k_p = jax.random.split(key)

    N, Cin, L = 2, 4, 16
    x = jax.random.normal(k_x, (N, Cin, L), jnp.float32)
    params = _init_params(k_p, Cin)

    ref = _ref_forward(x, params)

    # Exact-math path (f32 matmul operands): must match the reference tightly.
    out_f32 = jax.block_until_ready(
        inception_a_forward(x, params, compute_dtype=jnp.float32))
    assert out_f32.shape == (N, 88, L), out_f32.shape
    err_f32 = float(jnp.max(jnp.abs(out_f32 - ref)))
    assert jnp.allclose(out_f32, ref, rtol=1e-4, atol=1e-4), err_f32

    # Fast MXU path (bf16 operands, f32 accumulation) — the default per the
    # v6e/v7x perf feedback; checked to bf16-level tolerance.
    out_bf16 = jax.block_until_ready(inception_a_forward(x, params))
    assert out_bf16.shape == (N, 88, L), out_bf16.shape
    err_bf16 = float(jnp.max(jnp.abs(out_bf16 - ref)))
    assert jnp.allclose(out_bf16, ref, rtol=5e-2, atol=5e-2), err_bf16

    print("KERNEL_OK")
</pallas_src>

<mosaic_0001>
module attributes {stable_mosaic.version = 11 : i64} {
  func.func @inception_a_kernel(%arg0: i32, %arg1: memref<1x16x4xf32, #tpu.memory_space<vmem>>, %arg2: memref<12x72xf32, #tpu.memory_space<vmem>>, %arg3: memref<1x72xf32, #tpu.memory_space<vmem>>, %arg4: memref<128x48xf32, #tpu.memory_space<vmem>>, %arg5: memref<72x24xf32, #tpu.memory_space<vmem>>, %arg6: memref<1x72xf32, #tpu.memory_space<vmem>>, %arg7: memref<1x16x88xf32, #tpu.memory_space<vmem>>, %arg8: memref<1x16x12xf32, #tpu.memory_space<vmem>>, %arg9: memref<1x16x128xf32, #tpu.memory_space<vmem>>, %arg10: memref<1x16x72xf32, #tpu.memory_space<vmem>>) attributes {dimension_semantics = [#tpu.dimension_semantics<parallel>], iteration_bounds = array<i64: 2>, scalar_prefetch = 0 : i64, scratch_operands = 3 : i64, tpu.core_type = #tpu.core_type<tc>, window_params = [{transform_indices = @transform_0, window_bounds = array<i64: 1, 16, 4>}, {pipeline_mode = #tpu.pipeline_mode<synchronous>, transform_indices = @transform_1, window_bounds = array<i64: 12, 72>}, {pipeline_mode = #tpu.pipeline_mode<synchronous>, transform_indices = @transform_2, window_bounds = array<i64: 1, 72>}, {pipeline_mode = #tpu.pipeline_mode<synchronous>, transform_indices = @transform_3, window_bounds = array<i64: 128, 48>}, {pipeline_mode = #tpu.pipeline_mode<synchronous>, transform_indices = @transform_4, window_bounds = array<i64: 72, 24>}, {pipeline_mode = #tpu.pipeline_mode<synchronous>, transform_indices = @transform_5, window_bounds = array<i64: 1, 72>}, {transform_indices = @transform_6, window_bounds = array<i64: 1, 16, 88>}]} {
    %c0 = arith.constant 0 : index
    %c0_0 = arith.constant 0 : index
    %c0_1 = arith.constant 0 : index
    %0 = vector.load %arg1[%c0, %c0_0, %c0_1] : memref<1x16x4xf32, #tpu.memory_space<vmem>>, vector<1x16x4xf32>
    %cst = arith.constant 0.000000e+00 : f32
    %1 = vector.broadcast %cst : f32 to vector<1x1x4xf32>
    %2 = vector.extract_strided_slice %0 {offsets = [0, 0, 0], sizes = [1, 15, 4], strides = [1, 1, 1]} : vector<1x16x4xf32> to vector<1x15x4xf32>
    %3 = tpu.concatenate %1, %2 in 1 : vector<1x1x4xf32>, vector<1x15x4xf32> -> vector<1x16x4xf32>
    %c0_2 = arith.constant 0 : index
    %c0_3 = arith.constant 0 : index
    %c0_4 = arith.constant 0 : index
    %4 = vector.load %arg8[%c0_2, %c0_3, %c0_4] : memref<1x16x12xf32, #tpu.memory_space<vmem>>, vector<1x16x4xf32>
    tpu.vector_store %arg8[%c0_2, %c0_3, %c0_4], %3 {strides = array<i32>} : memref<1x16x12xf32, #tpu.memory_space<vmem>>, vector<1x16x4xf32>,
    %c0_5 = arith.constant 0 : index
    %c0_6 = arith.constant 0 : index
    %c4 = arith.constant 4 : index
    %5 = vector.load %arg8[%c0_5, %c0_6, %c4] : memref<1x16x12xf32, #tpu.memory_space<vmem>>, vector<1x16x4xf32>
    tpu.vector_store %arg8[%c0_5, %c0_6, %c4], %0 {strides = array<i32>} : memref<1x16x12xf32, #tpu.memory_space<vmem>>, vector<1x16x4xf32>,
    %6 = vector.extract_strided_slice %0 {offsets = [0, 1, 0], sizes = [1, 15, 4], strides = [1, 1, 1]} : vector<1x16x4xf32> to vector<1x15x4xf32>
    %cst_7 = arith.constant 0.000000e+00 : f32
    %7 = vector.broadcast %cst_7 : f32 to vector<1x1x4xf32>
    %8 = tpu.concatenate %6, %7 in 1 : vector<1x15x4xf32>, vector<1x1x4xf32> -> vector<1x16x4xf32>
    %c0_8 = arith.constant 0 : index
    %c0_9 = arith.constant 0 : index
    %c8 = arith.constant 8 : index
    %9 = vector.load %arg8[%c0_8, %c0_9, %c8] : memref<1x16x12xf32, #tpu.memory_space<vmem>>, vector<1x16x4xf32>
    tpu.vector_store %arg8[%c0_8, %c0_9, %c8], %8 {strides = array<i32>} : memref<1x16x12xf32, #tpu.memory_space<vmem>>, vector<1x16x4xf32>,
    %c0_10 = arith.constant 0 : index
    %c0_11 = arith.constant 0 : index
    %c0_12 = arith.constant 0 : index
    %10 = vector.load %arg8[%c0_10, %c0_11, %c0_12] : memref<1x16x12xf32, #tpu.memory_space<vmem>>, vector<1x16x12xf32>
    %11 = vector.shape_cast %10 : vector<1x16x12xf32> to vector<16x12xf32>
    %c0_13 = arith.constant 0 : index
    %c0_14 = arith.constant 0 : index
    %12 = vector.load %arg2[%c0_13, %c0_14] : memref<12x72xf32, #tpu.memory_space<vmem>>, vector<12x72xf32>
    %cst_15 = arith.constant dense<0.000000e+00> : vector<16x72xf32>
    %13 = tpu.matmul %11, %12, %cst_15 {dimension_numbers = #tpu.dot_dimension_numbers<[1], [0], [0], [1], [0, 0, 1, 1], [], []>} : vector<16x12xf32>, vector<12x72xf32>, vector<16x72xf32> -> vector<16x72xf32>
    %c0_16 = arith.constant 0 : index
    %c0_17 = arith.constant 0 : index
    %14 = vector.load %arg3[%c0_16, %c0_17] : memref<1x72xf32, #tpu.memory_space<vmem>>, vector<1x72xf32>
    %15 = vector.broadcast %14 : vector<1x72xf32> to vector<16x72xf32>
    %16 = arith.addf %13, %15 : vector<16x72xf32>
    %17 = vector.extract_strided_slice %16 {offsets = [0, 16], sizes = [16, 16], strides = [1, 1]} : vector<16x72xf32> to vector<16x16xf32>
    %18 = vector.shape_cast %17 : vector<16x16xf32> to vector<1x16x16xf32>
    %cst_18 = arith.constant 0.000000e+00 : f32
    %19 = vector.broadcast %cst_18 : f32 to vector<1x2x16xf32>
    %20 = vector.extract_strided_slice %18 {offsets = [0, 0, 0], sizes = [1, 14, 16], strides = [1, 1, 1]} : vector<1x16x16xf32> to vector<1x14x16xf32>
    %21 = tpu.concatenate %19, %20 in 1 : vector<1x2x16xf32>, vector<1x14x16xf32> -> vector<1x16x16xf32>
    %c0_19 = arith.constant 0 : index
    %c0_20 = arith.constant 0 : index
    %c0_21 = arith.constant 0 : index
    %22 = vector.load %arg9[%c0_19, %c0_20, %c0_21] : memref<1x16x128xf32, #tpu.memory_space<vmem>>, vector<1x16x16xf32>
    tpu.vector_store %arg9[%c0_19, %c0_20, %c0_21], %21 {strides = array<i32>} : memref<1x16x128xf32, #tpu.memory_space<vmem>>, vector<1x16x16xf32>,
    %cst_22 = arith.constant 0.000000e+00 : f32
    %23 = vector.broadcast %cst_22 : f32 to vector<1x1x16xf32>
    %24 = vector.extract_strided_slice %18 {offsets = [0, 0, 0], sizes = [1, 15, 16], strides = [1, 1, 1]} : vector<1x16x16xf32> to vector<1x15x16xf32>
    %25 = tpu.concatenate %23, %24 in 1 : vector<1x1x16xf32>, vector<1x15x16xf32> -> vector<1x16x16xf32>
    %c0_23 = arith.constant 0 : index
    %c0_24 = arith.constant 0 : index
    %c16 = arith.constant 16 : index
    %26 = vector.load %arg9[%c0_23, %c0_24, %c16] : memref<1x16x128xf32, #tpu.memory_space<vmem>>, vector<1x16x16xf32>
    tpu.vector_store %arg9[%c0_23, %c0_24, %c16], %25 {strides = array<i32>} : memref<1x16x128xf32, #tpu.memory_space<vmem>>, vector<1x16x16xf32>,
    %c0_25 = arith.constant 0 : index
    %c0_26 = arith.constant 0 : index
    %c32 = arith.constant 32 : index
    %27 = vector.load %arg9[%c0_25, %c0_26, %c32] : memref<1x16x128xf32, #tpu.memory_space<vmem>>, vector<1x16x16xf32>
    tpu.vector_store %arg9[%c0_25, %c0_26, %c32], %18 {strides = array<i32>} : memref<1x16x128xf32, #tpu.memory_space<vmem>>, vector<1x16x16xf32>,
    %28 = vector.extract_strided_slice %18 {offsets = [0, 1, 0], sizes = [1, 15, 16], strides = [1, 1, 1]} : vector<1x16x16xf32> to vector<1x15x16xf32>
    %cst_27 = arith.constant 0.000000e+00 : f32
    %29 = vector.broadcast %cst_27 : f32 to vector<1x1x16xf32>
    %30 = tpu.concatenate %28, %29 in 1 : vector<1x15x16xf32>, vector<1x1x16xf32> -> vector<1x16x16xf32>
    %c0_28 = arith.constant 0 : index
    %c0_29 = arith.constant 0 : index
    %c48 = arith.constant 48 : index
    %31 = vector.load %arg9[%c0_28, %c0_29, %c48] : memref<1x16x128xf32, #tpu.memory_space<vmem>>, vector<1x16x16xf32>
    tpu.vector_store %arg9[%c0_28, %c0_29, %c48], %30 {strides = array<i32>} : memref<1x16x128xf32, #tpu.memory_space<vmem>>, vector<1x16x16xf32>,
    %32 = vector.extract_strided_slice %18 {offsets = [0, 2, 0], sizes = [1, 14, 16], strides = [1, 1, 1]} : vector<1x16x16xf32> to vector<1x14x16xf32>
    %cst_30 = arith.constant 0.000000e+00 : f32
    %33 = vector.broadcast %cst_30 : f32 to vector<1x2x16xf32>
    %34 = tpu.concatenate %32, %33 in 1 : vector<1x14x16xf32>, vector<1x2x16xf32> -> vector<1x16x16xf32>
    %c0_31 = arith.constant 0 : index
    %c0_32 = arith.constant 0 : index
    %c64 = arith.constant 64 : index
    %35 = vector.load %arg9[%c0_31, %c0_32, %c64] : memref<1x16x128xf32, #tpu.memory_space<vmem>>, vector<1x16x16xf32>
    tpu.vector_store %arg9[%c0_31, %c0_32, %c64], %34 {strides = array<i32>} : memref<1x16x128xf32, #tpu.memory_space<vmem>>, vector<1x16x16xf32>,
    %36 = vector.extract_strided_slice %16 {offsets = [0, 32], sizes = [16, 16], strides = [1, 1]} : vector<16x72xf32> to vector<16x16xf32>
    %37 = vector.shape_cast %36 : vector<16x16xf32> to vector<1x16x16xf32>
    %cst_33 = arith.constant 0.000000e+00 : f32
    %38 = vector.broadcast %cst_33 : f32 to vector<1x1x16xf32>
    %39 = vector.extract_strided_slice %37 {offsets = [0, 0, 0], sizes = [1, 15, 16], strides = [1, 1, 1]} : vector<1x16x16xf32> to vector<1x15x16xf32>
    %40 = tpu.concatenate %38, %39 in 1 : vector<1x1x16xf32>, vector<1x15x16xf32> -> vector<1x16x16xf32>
    %c0_34 = arith.constant 0 : index
    %c0_35 = arith.constant 0 : index
    %c80 = arith.constant 80 : index
    %41 = vector.load %arg9[%c0_34, %c0_35, %c80] : memref<1x16x128xf32, #tpu.memory_space<vmem>>, vector<1x16x16xf32>
    tpu.vector_store %arg9[%c0_34, %c0_35, %c80], %40 {strides = array<i32>} : memref<1x16x128xf32, #tpu.memory_space<vmem>>, vector<1x16x16xf32>,
    %c0_36 = arith.constant 0 : index
    %c0_37 = arith.constant 0 : index
    %c96 = arith.constant 96 : index
    %42 = vector.load %arg9[%c0_36, %c0_37, %c96] : memref<1x16x128xf32, #tpu.memory_space<vmem>>, vector<1x16x16xf32>
    tpu.vector_store %arg9[%c0_36, %c0_37, %c96], %37 {strides = array<i32>} : memref<1x16x128xf32, #tpu.memory_space<vmem>>, vector<1x16x16xf32>,
    %43 = vector.extract_strided_slice %37 {offsets = [0, 1, 0], sizes = [1, 15, 16], strides = [1, 1, 1]} : vector<1x16x16xf32> to vector<1x15x16xf32>
    %cst_38 = arith.constant 0.000000e+00 : f32
    %44 = vector.broadcast %cst_38 : f32 to vector<1x1x16xf32>
    %45 = tpu.concatenate %43, %44 in 1 : vector<1x15x16xf32>, vector<1x1x16xf32> -> vector<1x16x16xf32>
    %c0_39 = arith.constant 0 : index
    %c0_40 = arith.constant 0 : index
    %c112 = arith.constant 112 : index
    %46 = vector.load %arg9[%c0_39, %c0_40, %c112] : memref<1x16x128xf32, #tpu.memory_space<vmem>>, vector<1x16x16xf32>
    tpu.vector_store %arg9[%c0_39, %c0_40, %c112], %45 {strides = array<i32>} : memref<1x16x128xf32, #tpu.memory_space<vmem>>, vector<1x16x16xf32>,
    %c0_41 = arith.constant 0 : index
    %c0_42 = arith.constant 0 : index
    %c0_43 = arith.constant 0 : index
    %47 = vector.load %arg9[%c0_41, %c0_42, %c0_43] : memref<1x16x128xf32, #tpu.memory_space<vmem>>, vector<1x16x128xf32>
    %48 = vector.shape_cast %47 : vector<1x16x128xf32> to vector<16x128xf32>
    %c0_44 = arith.constant 0 : index
    %c0_45 = arith.constant 0 : index
    %49 = vector.load %arg4[%c0_44, %c0_45] : memref<128x48xf32, #tpu.memory_space<vmem>>, vector<128x48xf32>
    %cst_46 = arith.constant dense<0.000000e+00> : vector<16x48xf32>
    %50 = tpu.matmul %48, %49, %cst_46 {dimension_numbers = #tpu.dot_dimension_numbers<[1], [0], [0], [1], [0, 0, 1, 1], [], []>} : vector<16x128xf32>, vector<128x48xf32>, vector<16x48xf32> -> vector<16x48xf32>
    %c0_47 = arith.constant 0 : index
    %c0_48 = arith.constant 0 : index
    %51 = vector.load %arg6[%c0_47, %c0_48] : memref<1x72xf32, #tpu.memory_space<vmem>>, vector<1x48xf32>
    %52 = vector.broadcast %51 : vector<1x48xf32> to vector<16x48xf32>
    %53 = arith.addf %50, %52 : vector<16x48xf32>
    %54 = vector.extract_strided_slice %53 {offsets = [0, 24], sizes = [16, 24], strides = [1, 1]} : vector<16x48xf32> to vector<16x24xf32>
    %55 = vector.shape_cast %54 : vector<16x24xf32> to vector<1x16x24xf32>
    %cst_49 = arith.constant 0.000000e+00 : f32
    %56 = vector.broadcast %cst_49 : f32 to vector<1x1x24xf32>
    %57 = vector.extract_strided_slice %55 {offsets = [0, 0, 0], sizes = [1, 15, 24], strides = [1, 1, 1]} : vector<1x16x24xf32> to vector<1x15x24xf32>
    %58 = tpu.concatenate %56, %57 in 1 : vector<1x1x24xf32>, vector<1x15x24xf32> -> vector<1x16x24xf32>
    %c0_50 = arith.constant 0 : index
    %c0_51 = arith.constant 0 : index
    %c0_52 = arith.constant 0 : index
    %59 = vector.load %arg10[%c0_50, %c0_51, %c0_52] : memref<1x16x72xf32, #tpu.memory_space<vmem>>, vector<1x16x24xf32>
    tpu.vector_store %arg10[%c0_50, %c0_51, %c0_52], %58 {strides = array<i32>} : memref<1x16x72xf32, #tpu.memory_space<vmem>>, vector<1x16x24xf32>,
    %c0_53 = arith.constant 0 : index
    %c0_54 = arith.constant 0 : index
    %c24 = arith.constant 24 : index
    %60 = vector.load %arg10[%c0_53, %c0_54, %c24] : memref<1x16x72xf32, #tpu.memory_space<vmem>>, vector<1x16x24xf32>
    tpu.vector_store %arg10[%c0_53, %c0_54, %c24], %55 {strides = array<i32>} : memref<1x16x72xf32, #tpu.memory_space<vmem>>, vector<1x16x24xf32>,
    %61 = vector.extract_strided_slice %55 {offsets = [0, 1, 0], sizes = [1, 15, 24], strides = [1, 1, 1]} : vector<1x16x24xf32> to vector<1x15x24xf32>
    %cst_55 = arith.constant 0.000000e+00 : f32
    %62 = vector.broadcast %cst_55 : f32 to vector<1x1x24xf32>
    %63 = tpu.concatenate %61, %62 in 1 : vector<1x15x24xf32>, vector<1x1x24xf32> -> vector<1x16x24xf32>
    %c0_56 = arith.constant 0 : index
    %c0_57 = arith.constant 0 : index
    %c48_58 = arith.constant 48 : index
    %64 = vector.load %arg10[%c0_56, %c0_57, %c48_58] : memref<1x16x72xf32, #tpu.memory_space<vmem>>, vector<1x16x24xf32>
    tpu.vector_store %arg10[%c0_56, %c0_57, %c48_58], %63 {strides = array<i32>} : memref<1x16x72xf32, #tpu.memory_space<vmem>>, vector<1x16x24xf32>,
    %c0_59 = arith.constant 0 : index
    %c0_60 = arith.constant 0 : index
    %c0_61 = arith.constant 0 : index
    %65 = vector.load %arg10[%c0_59, %c0_60, %c0_61] : memref<1x16x72xf32, #tpu.memory_space<vmem>>, vector<1x16x72xf32>
    %66 = vector.shape_cast %65 : vector<1x16x72xf32> to vector<16x72xf32>
    %c0_62 = arith.constant 0 : index
    %c0_63 = arith.constant 0 : index
    %67 = vector.load %arg5[%c0_62, %c0_63] : memref<72x24xf32, #tpu.memory_space<vmem>>, vector<72x24xf32>
    %cst_64 = arith.constant dense<0.000000e+00> : vector<16x24xf32>
    %68 = tpu.matmul %66, %67, %cst_64 {dimension_numbers = #tpu.dot_dimension_numbers<[1], [0], [0], [1], [0, 0, 1, 1], [], []>} : vector<16x72xf32>, vector<72x24xf32>, vector<16x24xf32> -> vector<16x24xf32>
    %c0_65 = arith.constant 0 : index
    %c48_66 = arith.constant 48 : index
    %69 = vector.load %arg6[%c0_65, %c48_66] : memref<1x72xf32, #tpu.memory_space<vmem>>, vector<1x24xf32>
    %70 = vector.broadcast %69 : vector<1x24xf32> to vector<16x24xf32>
    %71 = arith.addf %68, %70 : vector<16x24xf32>
    %72 = vector.extract_strided_slice %16 {offsets = [0, 0], sizes = [16, 16], strides = [1, 1]} : vector<16x72xf32> to vector<16x16xf32>
    %73 = vector.extract_strided_slice %53 {offsets = [0, 0], sizes = [16, 24], strides = [1, 1]} : vector<16x48xf32> to vector<16x24xf32>
    %74 = vector.extract_strided_slice %16 {offsets = [0, 48], sizes = [16, 24], strides = [1, 1]} : vector<16x72xf32> to vector<16x24xf32>
    %75 = tpu.concatenate %72, %73, %71, %74 in 1 : vector<16x16xf32>, vector<16x24xf32>, vector<16x24xf32>, vector<16x24xf32> -> vector<16x88xf32>
    %76 = vector.shape_cast %75 : vector<16x88xf32> to vector<1x16x88xf32>
    %c0_67 = arith.constant 0 : index
    %c0_68 = arith.constant 0 : index
    %c0_69 = arith.constant 0 : index
    %77 = vector.load %arg7[%c0_67, %c0_68, %c0_69] : memref<1x16x88xf32, #tpu.memory_space<vmem>>, vector<1x16x88xf32>
    tpu.vector_store %arg7[%c0_67, %c0_68, %c0_69], %76 {strides = array<i32>} : memref<1x16x88xf32, #tpu.memory_space<vmem>>, vector<1x16x88xf32>,
    return
  }
  func.func @transform_0(%arg0: i32) -> (i32, i32, i32) {
    %c0_i32 = arith.constant 0 : i32
    %c0_i32_0 = arith.constant 0 : i32
    %c0_i32_1 = arith.constant 0 : i32
    return %arg0, %c0_i32, %c0_i32_0 : i32, i32, i32
  }
  func.func @transform_1(%arg0: i32) -> (i32, i32) {
    %c0_i32 = arith.constant 0 : i32
    %c0_i32_0 = arith.constant 0 : i32
    %c0_i32_1 = arith.constant 0 : i32
    return %c0_i32, %c0_i32_0 : i32, i32
  }
  func.func @transform_2(%arg0: i32) -> (i32, i32) {
    %c0_i32 = arith.constant 0 : i32
    %c0_i32_0 = arith.constant 0 : i32
    %c0_i32_1 = arith.constant 0 : i32
    return %c0_i32, %c0_i32_0 : i32, i32
  }
  func.func @transform_3(%arg0: i32) -> (i32, i32) {
    %c0_i32 = arith.constant 0 : i32
    %c0_i32_0 = arith.constant 0 : i32
    %c0_i32_1 = arith.constant 0 : i32
    return %c0_i32, %c0_i32_0 : i32, i32
  }
  func.func @transform_4(%arg0: i32) -> (i32, i32) {
    %c0_i32 = arith.constant 0 : i32
    %c0_i32_0 = arith.constant 0 : i32
    %c0_i32_1 = arith.constant 0 : i32
    return %c0_i32, %c0_i32_0 : i32, i32
  }
  func.func @transform_5(%arg0: i32) -> (i32, i32) {
    %c0_i32 = arith.constant 0 : i32
    %c0_i32_0 = arith.constant 0 : i32
    %c0_i32_1 = arith.constant 0 : i32
    return %c0_i32, %c0_i32_0 : i32, i32
  }
  func.func @transform_6(%arg0: i32) -> (i32, i32, i32) {
    %c0_i32 = arith.constant 0 : i32
    %c0_i32_0 = arith.constant 0 : i32
    %c0_i32_1 = arith.constant 0 : i32
    return %arg0, %c0_i32, %c0_i32_0 : i32, i32, i32
  }
}

</mosaic_0001>

<llo_original>
// kernel: inception_a_forward.1
$region0: #{inception_a_forward.1}
  #allocation0 [shape = 'u32[]', space=smem, size = 0x4, offset = 0x4, fixed_abs, tag = 'smem constant byte address 0x4 - core index']
  #allocation1 [shape = 'u32[144,128]{1,0:T(1,128)}', space=vmem, size = 0x12000, scoped, tag = 'internal scratch']
  #allocation2 [shape = 'f32[1,16,12]{2,1,0:T(8,128)}', space=vmem, size = 0x2000, scoped, tag = 'scratch operand']
  #allocation3 [shape = 'f32[1,16,128]{2,1,0:T(8,128)}', space=vmem, size = 0x2000, scoped, tag = 'scratch operand']
  #allocation4 [shape = 'f32[1,16,72]{2,1,0:T(8,128)}', space=vmem, size = 0x2000, scoped, tag = 'scratch operand']
  %s0 = inlined_call_operand.vmem [shape: f32[2,16,4], index: 0, kind: input, shape index: {}]
  %s1 = inlined_call_operand.vmem [shape: f32[12,72], index: 1, kind: input, shape index: {}]
  %s2 = inlined_call_operand.vmem [shape: f32[1,72], index: 2, kind: input, shape index: {}]
  %s3 = inlined_call_operand.vmem [shape: f32[128,48], index: 3, kind: input, shape index: {}]
  %s4 = inlined_call_operand.vmem [shape: f32[72,24], index: 4, kind: input, shape index: {}]
  %s5 = inlined_call_operand.vmem [shape: f32[1,72], index: 5, kind: input, shape index: {}]
  %s6 = inlined_call_operand.hbm [shape: f32[2,16,88], index: 6, kind: output, shape index: {}]
  %s7 = sld [smem:[#allocation0]]
  $region57: #{inception_a_forward.1} parent=0
    _
  %s9 = ssub.s32 1, %s7
  %s10 = scalar_select 0, %s9, %s7
  $region1: #{inception_a_forward.1} parent=0
    #allocation5 [shape = 'u8[16384]{0}', space=vmem, size = 0x4000, scoped, tag = 'output window, operand 0']
    #allocation6 [shape = 's32[2]{0}', space=sflag, size = 0x8, scoped, tag = 'scoped memory for inception_a_forward.1']
    %11 = vsyncpa [#allocation6], 0
    %s12 = scalar_lea.sflag [#allocation6], 1
    %13 = vsyncpa %s12, 0
    loop: start=0, step=1, limit=4
    $region2: #{inception_a_forward.1} parent=1 // loop_pre_header
      _
    $region3: #{inception_a_forward.1} parent=1 // loop_header
      %s15 = sphi 0, %s19
      %p16 = scmp.ge.s32.totalorder %s15, 4
      %s25 = sphi 0, %s27
      %s28 = sphi 0, %s25
      %s29 = sphi 0, %s28
      %s45 = sphi 0, %s29
      %s49 = sphi 0, %s49
      %s51 = sphi 0, %s49
      %s52 = sphi 0, %s51
      %s66 = sphi 0, %s52
      %s70 = sphi 0, %s70
      %s72 = sphi 0, %s70
      %s73 = sphi 0, %s72
      %s87 = sphi 0, %s73
      %s91 = sphi 0, %s91
      %s93 = sphi 0, %s91
      %s94 = sphi 0, %s93
      %s108 = sphi 0, %s94
      %s112 = sphi 0, %s112
      %s114 = sphi 0, %s112
      %s115 = sphi 0, %s114
      %s129 = sphi 0, %s115
      %s133 = sphi 0, %s133
      %s135 = sphi 0, %s133
      %s136 = sphi 0, %s135
      %s150 = sphi 0, %s136
      %s156 = sphi 0, %s158
      %s159 = sphi 0, %s156
      %s160 = sphi 0, %s159
      %s176 = sphi 0, %s160
    $region4: #{inception_a_forward.1} parent=1 // loop_header_branch
      %18 = sbr.rel (%p16) target = $region8
    $region5: #{inception_a_forward.1} parent=1 // loop_body
      %s20 = ssub.s32 %s15, 1
      %s21 = ssub.s32 %s15, 2
      %s22 = sadd.s32 %s15, 1
      %s23 = ssub.s32 %s15, %s22
      %p24 = scmp.eq.s32.totalorder %s23, 0
      %s26 = sadd.s32 %s25, 1
      %s27 = scalar_select %p24, %s25, %s26
      %p30 = pneg %p24
      %p31 = scmp.eq.s32.totalorder %s15, 1
      %p32 = por %p30, %p31
      %p33 = scmp.ne.s32.totalorder %s25, %s28
      %p34 = scmp.eq.s32.totalorder %s15, 0
      %p35 = por %p33, %p34
      %p36 = scmp.ne.s32.totalorder %s25, %s28
      %p37 = scmp.eq.s32.totalorder %s20, 1
      %p38 = por %p36, %p37
      %p39 = scmp.ne.s32.totalorder %s28, %s29
      %p40 = scmp.eq.s32.totalorder %s20, 0
      %p41 = por %p39, %p40
      %p42 = scmp.ne.s32.totalorder %s28, %s29
      %p43 = scmp.eq.s32.totalorder %s21, 1
      %p44 = por %p42, %p43
      %p46 = scmp.ne.s32.totalorder %s29, %s45
      %p47 = scmp.eq.s32.totalorder %s21, 0
      %p48 = por %p46, %p47
      %s50 = sadd.s32 %s49, 1
      %p53 = scmp.eq.s32.totalorder %s15, 1
      %p54 = scmp.ne.s32.totalorder %s49, %s51
      %p55 = scmp.eq.s32.totalorder %s15, 0
      %p56 = por %p54, %p55
      %p57 = scmp.ne.s32.totalorder %s49, %s51
      %p58 = scmp.eq.s32.totalorder %s20, 1
      %p59 = por %p57, %p58
      %p60 = scmp.ne.s32.totalorder %s51, %s52
      %p61 = scmp.eq.s32.totalorder %s20, 0
      %p62 = por %p60, %p61
      %p63 = scmp.ne.s32.totalorder %s51, %s52
      %p64 = scmp.eq.s32.totalorder %s21, 1
      %p65 = por %p63, %p64
      %p67 = scmp.ne.s32.totalorder %s52, %s66
      %p68 = scmp.eq.s32.totalorder %s21, 0
      %p69 = por %p67, %p68
      %s71 = sadd.s32 %s70, 1
      %p74 = scmp.eq.s32.totalorder %s15, 1
      %p75 = scmp.ne.s32.totalorder %s70, %s72
      %p76 = scmp.eq.s32.totalorder %s15, 0
      %p77 = por %p75, %p76
      %p78 = scmp.ne.s32.totalorder %s70, %s72
      %p79 = scmp.eq.s32.totalorder %s20, 1
      %p80 = por %p78, %p79
      %p81 = scmp.ne.s32.totalorder %s72, %s73
      %p82 = scmp.eq.s32.totalorder %s20, 0
      %p83 = por %p81, %p82
      %p84 = scmp.ne.s32.totalorder %s72, %s73
      %p85 = scmp.eq.s32.totalorder %s21, 1
      %p86 = por %p84, %p85
      %p88 = scmp.ne.s32.totalorder %s73, %s87
      %p89 = scmp.eq.s32.totalorder %s21, 0
      %p90 = por %p88, %p89
      %s92 = sadd.s32 %s91, 1
      %p95 = scmp.eq.s32.totalorder %s15, 1
      %p96 = scmp.ne.s32.totalorder %s91, %s93
      %p97 = scmp.eq.s32.totalorder %s15, 0
      %p98 = por %p96, %p97
      %p99 = scmp.ne.s32.totalorder %s91, %s93
      %p100 = scmp.eq.s32.totalorder %s20, 1
      %p101 = por %p99, %p100
      %p102 = scmp.ne.s32.totalorder %s93, %s94
      %p103 = scmp.eq.s32.totalorder %s20, 0
      %p104 = por %p102, %p103
      %p105 = scmp.ne.s32.totalorder %s93, %s94
      %p106 = scmp.eq.s32.totalorder %s21, 1
      %p107 = por %p105, %p106
      %p109 = scmp.ne.s32.totalorder %s94, %s108
      %p110 = scmp.eq.s32.totalorder %s21, 0
      %p111 = por %p109, %p110
      %s113 = sadd.s32 %s112, 1
      %p116 = scmp.eq.s32.totalorder %s15, 1
      %p117 = scmp.ne.s32.totalorder %s112, %s114
      %p118 = scmp.eq.s32.totalorder %s15, 0
      %p119 = por %p117, %p118
      %p120 = scmp.ne.s32.totalorder %s112, %s114
      %p121 = scmp.eq.s32.totalorder %s20, 1
      %p122 = por %p120, %p121
      %p123 = scmp.ne.s32.totalorder %s114, %s115
      %p124 = scmp.eq.s32.totalorder %s20, 0
      %p125 = por %p123, %p124
      %p126 = scmp.ne.s32.totalorder %s114, %s115
      %p127 = scmp.eq.s32.totalorder %s21, 1
      %p128 = por %p126, %p127
      %p130 = scmp.ne.s32.totalorder %s115, %s129
      %p131 = scmp.eq.s32.totalorder %s21, 0
      %p132 = por %p130, %p131
      %s134 = sadd.s32 %s133, 1
      %p137 = scmp.eq.s32.totalorder %s15, 1
      %p138 = scmp.ne.s32.totalorder %s133, %s135
      %p139 = scmp.eq.s32.totalorder %s15, 0
      %p140 = por %p138, %p139
      %p141 = scmp.ne.s32.totalorder %s133, %s135
      %p142 = scmp.eq.s32.totalorder %s20, 1
      %p143 = por %p141, %p142
      %p144 = scmp.ne.s32.totalorder %s135, %s136
      %p145 = scmp.eq.s32.totalorder %s20, 0
      %p146 = por %p144, %p145
      %p147 = scmp.ne.s32.totalorder %s135, %s136
      %p148 = scmp.eq.s32.totalorder %s21, 1
      %p149 = por %p147, %p148
      %p151 = scmp.ne.s32.totalorder %s136, %s150
      %p152 = scmp.eq.s32.totalorder %s21, 0
      %p153 = por %p151, %p152
      %s154 = ssub.s32 %s15, %s22
      %p155 = scmp.eq.s32.totalorder %s154, 0
      %s157 = sadd.s32 %s156, 1
      %s158 = scalar_select %p155, %s156, %s157
      %p161 = pneg %p155
      %p162 = scmp.eq.s32.totalorder %s15, 1
      %p163 = por %p161, %p162
      %p164 = scmp.ne.s32.totalorder %s156, %s159
      %p165 = scmp.eq.s32.totalorder %s15, 0
      %p166 = por %p164, %p165
      %p167 = scmp.ne.s32.totalorder %s156, %s159
      %p168 = scmp.eq.s32.totalorder %s20, 1
      %p169 = por %p167, %p168
      %p170 = scmp.ne.s32.totalorder %s159, %s160
      %p171 = scmp.eq.s32.totalorder %s20, 0
      %p172 = por %p170, %p171
      %p173 = scmp.ne.s32.totalorder %s159, %s160
      %p174 = scmp.eq.s32.totalorder %s21, 1
      %p175 = por %p173, %p174
      %p177 = scmp.ne.s32.totalorder %s160, %s176
      %p178 = scmp.eq.s32.totalorder %s21, 0
      %p179 = por %p177, %p178
      %p180 = scmp.le.s32.totalorder 1, %s15
      %p181 = scmp.lt.s32.totalorder %s15, 3
      %p182 = pnand %p180, %p181
      %p183 = pneg %p182
      // Predicated region
      $region9: #{inception_a_forward.1} parent=5 // pred_check
        _
      $region10: #{inception_a_forward.1} parent=5 // pred_check_branch
        %185 = sbr.rel (%p182) target = $region12
      $region11: #{inception_a_forward.1} parent=5 // pred_region
        %s186 = ssub.s32 %s15, 1
        // Predicated region
        $region13: #{inception_a_forward.1} parent=11 // pred_check
          %p187 = pneg %p62
        $region14: #{inception_a_forward.1} parent=11 // pred_check_branch
          %189 = sbr.rel (%p187) target = $region16
        $region15: #{inception_a_forward.1} parent=11 // pred_region
          _
        $region16: #{inception_a_forward.1} parent=11 // pred_fallthru
          _
        // Predicated region
        $region17: #{inception_a_forward.1} parent=11 // pred_check
          %p190 = pneg %p83
        $region18: #{inception_a_forward.1} parent=11 // pred_check_branch
          %192 = sbr.rel (%p190) target = $region20
        $region19: #{inception_a_forward.1} parent=11 // pred_region
          _
        $region20: #{inception_a_forward.1} parent=11 // pred_fallthru
          _
        // Predicated region
        $region21: #{inception_a_forward.1} parent=11 // pred_check
          %p193 = pneg %p104
        $region22: #{inception_a_forward.1} parent=11 // pred_check_branch
          %195 = sbr.rel (%p193) target = $region24
        $region23: #{inception_a_forward.1} parent=11 // pred_region
          _
        $region24: #{inception_a_forward.1} parent=11 // pred_fallthru
          _
        // Predicated region
        $region25: #{inception_a_forward.1} parent=11 // pred_check
          %p196 = pneg %p125
        $region26: #{inception_a_forward.1} parent=11 // pred_check_branch
          %198 = sbr.rel (%p196) target = $region28
        $region27: #{inception_a_forward.1} parent=11 // pred_region
          _
        $region28: #{inception_a_forward.1} parent=11 // pred_fallthru
          _
        // Predicated region
        $region29: #{inception_a_forward.1} parent=11 // pred_check
          %p199 = pneg %p146
        $region30: #{inception_a_forward.1} parent=11 // pred_check_branch
          %201 = sbr.rel (%p199) target = $region32
        $region31: #{inception_a_forward.1} parent=11 // pred_region
          _
        $region32: #{inception_a_forward.1} parent=11 // pred_fallthru
          _
      $region12: #{inception_a_forward.1} parent=5 // pred_fallthru
        _
      %p202 = scmp.lt.s32.totalorder %s15, 2
      // Predicated region
      $region33: #{inception_a_forward.1} parent=5 // pred_check
        %p203 = pneg %p202
      $region34: #{inception_a_forward.1} parent=5 // pred_check_branch
        %205 = sbr.rel (%p203) target = $region36
      $region35: #{inception_a_forward.1} parent=5 // pred_region
        // Predicated region
        $region37: #{inception_a_forward.1} parent=35 // pred_check
          %p206 = pneg %p35
        $region38: #{inception_a_forward.1} parent=35 // pred_check_branch
          %208 = sbr.rel (%p206) target = $region40
        $region39: #{inception_a_forward.1} parent=35 // pred_region
          %p209 = scmp.lt.s32.totalorder %s15, 1
          %s210 = scalar_select %p209, %s15, 1
          %s211 = smul.addr %s210, 2
          %s212 = smul.addr %s211, 8
          %s213 = scalar_lea.vmem %s0, %s212
        $region40: #{inception_a_forward.1} parent=35 // pred_fallthru
          _
      $region36: #{inception_a_forward.1} parent=5 // pred_fallthru
        _
      %p214 = scmp.le.s32.totalorder 1, %s15
      %p215 = scmp.lt.s32.totalorder %s15, 3
      %p216 = pnand %p214, %p215
      %p217 = pneg %p216
      // Predicated region
      $region41: #{inception_a_forward.1} parent=5 // pred_check
        _
      $region42: #{inception_a_forward.1} parent=5 // pred_check_branch
        %219 = sbr.rel (%p216) target = $region44
      $region43: #{inception_a_forward.1} parent=5 // pred_region
        %s220 = ssub.s32 %s15, 1
        %p221 = scmp.lt.s32.totalorder %s20, 1
        %s222 = scalar_select %p221, %s20, 1
        %s223 = smul.addr %s222, 2
        %s224 = smul.addr %s223, 8
        %s225 = scalar_lea.vmem %s0, %s224
        %p226 = pneg %p41
        %p227 = pneg %p38
        %p228 = pneg %p62
        %p229 = pneg %p59
        %p230 = pneg %p83
        %p231 = pneg %p80
        %p232 = pneg %p104
        %p233 = pneg %p101
        %p234 = pneg %p125
        %p235 = pneg %p122
        %p236 = pneg %p146
        %p237 = pneg %p143
        %p238 = pneg %p172
        %p239 = pneg %p169
        %s240 = sand.u32 %s159, 1
        %s241 = scalar_lea.sflag [#allocation6], %s240
        %s242 = sand.u32 %s159, 1
        %s243 = smul.addr %s242, 16
        %s244 = scalar_lea.vmem [#allocation5], %s243
        %p245 = scmp.lt.s32.totalorder %s20, 1
        %s246 = scalar_select %p245, %s20, 1
        %s247 = smul.addr %s246, 2
        %s248 = smul.addr %s247, 8
        %s249 = scalar_lea.vmem %s0, %s248
        %v250 = vld [vmem:[%s249] sm:$0xff]
        %v251 = vld [vmem:[%s249 + $0x8] sm:$0xff]
        %vm254 = vcmask 1040384
        %v255 = vrot.slane %v250, 7
        %v256 = vrot.slane %v251, 7
        %v257 = vsel %vm254, %v255, %v256
        %v260 = vsel %vm254, 0.0, %v255
        %vm261 = vcmask 31744
        %262 = vst.msk [vmem:[#allocation2] sm:$0xff] %vm261, %v260
        %263 = vst.msk [vmem:[#allocation2 + $0x8] sm:$0xff] %vm261, %v257
        %264 = vrot.lane.b32.xlu0 %v250, 4
        %v265 = vpop.permute.xlu0 %264
        %266 = vrot.lane.b32.xlu0 %v251, 4
        %v267 = vpop.permute.xlu0 %266
        %vm270 = vcmask 64544
        %271 = vst.msk [vmem:[#allocation2] sm:$0xff] %vm270, %v265
        %272 = vst.msk [vmem:[#allocation2 + $0x8] sm:$0xff] %vm270, %v267
        %vm273 = vcmask 1046528
        %v274 = vrot.slane %v250, 1
        %v275 = vrot.slane %v251, 1
        %v276 = vsel %vm273, %v274, %v275
        %v278 = vsel %vm273, %v275, 0.0
        %280 = vrot.lane.b32.xlu0 %v276, 8
        %v281 = vpop.permute.xlu0 %280
        %282 = vrot.lane.b32.xlu0 %v278, 8
        %v283 = vpop.permute.xlu0 %282
        %vm286 = vcmask 97344
        %287 = vst.msk [vmem:[#allocation2] sm:$0xff] %vm286, %v281
        %288 = vst.msk [vmem:[#allocation2 + $0x8] sm:$0xff] %vm286, %v283
        %v289 = vld [vmem:[#allocation2] sm:$0xff]
        %v290 = vld [vmem:[#allocation2 + $0x8] sm:$0xff]
        %v291 = vld [vmem:[%s1] sm:$0xff]
        %v292 = vld [vmem:[%s1 + $0x8] sm:$0xf]
        %v293 = vld [vmem:[%s2] sm:$0x1]
        %v295 = vlaneseq
        %v296 = vshrl.u32 %v295, 7
        %v297 = vsub.s32 0, %v296
        %v298 = vrot.slane %v293, %v297
        %vm300 = vcmask 97280
        %v302 = vsel %vm300, %v289, 0
        %v305 = vsel %vm300, %v290, 0
        %vm307 = vcmask 1043456
        %v309 = vsel %vm307, %v292, 0
        %311 = vmatprep.subr.mxu0 0.0
        %312 = vmatpush1.msra.mxu0 %v291
        %313 = vmatprep.subr.mxu0 0.0
        %314 = vmatpush1.msra.mxu0 %v309
        %315 = vmatprep.subr.mxu0 0.0
        %316 = vmatpush1.msra.mxu0 0.0
        %317 = vmatprep.subr.mxu0 0.0
        %318 = vmatpush1.msra.mxu0 0.0
        %319 = vmatprep.subr.mxu0 0.0
        %320 = vmatpush1.msra.mxu0 0.0
        %321 = vmatprep.subr.mxu0 0.0
        %322 = vmatpush1.msra.mxu0 0.0
        %323 = vmatprep.subr.mxu0 0.0
        %324 = vmatpush1.msra.mxu0 0.0
        %325 = vmatprep.subr.mxu0 0.0
        %326 = vmatpush1.msra.mxu0 0.0
        %327 = vmatprep.subr.mxu0 0.0
        %328 = vmatpush1.msra.mxu0 0.0
        %329 = vmatprep.subr.mxu0 0.0
        %330 = vmatpush1.msra.mxu0 0.0
        %331 = vmatprep.subr.mxu0 0.0
        %332 = vmatpush1.msra.mxu0 0.0
        %333 = vmatprep.subr.mxu0 0.0
        %334 = vmatpush1.msra.mxu0 0.0
        %335 = vmatprep.subr.mxu0 0.0
        %336 = vmatpush1.msra.mxu0 0.0
        %337 = vmatprep.subr.mxu0 0.0
        %338 = vmatpush1.msra.mxu0 0.0
        %339 = vmatprep.subr.mxu0 0.0
        %340 = vmatpush1.msra.mxu0 0.0
        %341 = vmatprep.subr.mxu0 0.0
        %342 = vmatpush1.msra.mxu0 0.0
        %343 = vmatprep.subr.mxu0 0.0
        %344 = vmatpush1.msra.mxu0 0.0
        %345 = vmatprep.subr.mxu0 0.0
        %346 = vmatpush1.msra.mxu0 0.0
        %347 = vmatprep.subr.mxu0 0.0
        %348 = vmatpush1.msra.mxu0 0.0
        %349 = vmatprep.subr.mxu0 0.0
        %350 = vmatpush1.msra.mxu0 0.0
        %351 = vmatprep.subr.mxu0 0.0
        %352 = vmatpush1.msra.mxu0 0.0
        %353 = vmatprep.subr.mxu0 0.0
        %354 = vmatpush1.msra.mxu0 0.0
        %355 = vmatprep.subr.mxu0 0.0
        %356 = vmatpush1.msra.mxu0 0.0
        %357 = vmatprep.subr.mxu0 0.0
        %358 = vmatpush1.msra.mxu0 0.0
        %359 = vmatprep.subr.mxu0 0.0
        %360 = vmatpush1.msra.mxu0 0.0
        %361 = vmatprep.subr.mxu0 0.0
        %362 = vmatpush1.msra.mxu0 0.0
        %363 = vmatprep.subr.mxu0 0.0
        %364 = vmatpush1.msra.mxu0 0.0
        %365 = vmatprep.subr.mxu0 0.0
        %366 = vmatpush1.msra.mxu0 0.0
        %367 = vmatprep.subr.mxu0 0.0
        %368 = vmatpush1.msra.mxu0 0.0
        %369 = vmatprep.subr.mxu0 0.0
        %370 = vmatpush1.msra.mxu0 0.0
        %371 = vmatprep.subr.mxu0 0.0
        %372 = vmatpush1.msra.mxu0 0.0
        %373 = vmatprep.subr.mxu0 0.0
        %374 = vmatpush1.msra.mxu0 0.0
        %375 = vmatprep.mubr.f32.mxu0 0.0
        %376 = vmatmul.mubr.f32.gmra.mrb[0].mxu0 %v302
        %v377 = vpop.f32.mrb[0].mxu0
        %v378 = vadd.f32 %v298, %v377
        %v379 = vpop.f32.mrb[0].mxu0
        %380 = vmatprep.mubr.f32.mxu0 0.0
        %381 = vmatmul.mubr.f32.gmra.mrb[0].mxu0 %v305
        %v382 = vpop.f32.mrb[0].mxu0
        %v383 = vadd.f32 %v298, %v382
        %v384 = vpop.f32.mrb[0].mxu0
        %385 = vdwg.mxu0
        %vm388 = vcmask 1041408
        %v389 = vrot.slane %v378, 6
        %v390 = vrot.slane %v383, 6
        %v391 = vsel %vm388, %v389, %v390
        %392 = vrot.lane.b32.xlu0 %v389, 112
        %v393 = vpop.permute.xlu0 %392
        %394 = vrot.lane.b32.xlu0 %v391, 112
        %v395 = vpop.permute.xlu0 %394
        %v398 = vsel %vm388, 0.0, %v393
        %vm399 = vcmask 130048
        %400 = vst.msk [vmem:[#allocation3] sm:$0xff] %vm399, %v398
        %401 = vst.msk [vmem:[#allocation3 + $0x8] sm:$0xff] %vm399, %v395
        %v402 = vrot.slane %v378, 7
        %v403 = vrot.slane %v383, 7
        %v404 = vsel %vm254, %v402, %v403
        %405 = vrot.lane.b32.xlu0 %v402, 112
        %v406 = vpop.permute.xlu0 %405
        %407 = vrot.lane.b32.xlu0 %v404, 112
        %v408 = vpop.permute.xlu0 %407
        %v410 = vsel %vm254, 0.0, %v406
        %412 = vrot.lane.b32.xlu0 %v410, 16
        %v413 = vpop.permute.xlu0 %412
        %414 = vrot.lane.b32.xlu0 %v408, 16
        %v415 = vpop.permute.xlu0 %414
        %vm418 = vcmask 261248
        %419 = vst.msk [vmem:[#allocation3] sm:$0xff] %vm418, %v413
        %420 = vst.msk [vmem:[#allocation3 + $0x8] sm:$0xff] %vm418, %v415
        %421 = vrot.lane.b32.xlu0 %v378, 16
        %v422 = vpop.permute.xlu0 %421
        %423 = vrot.lane.b32.xlu0 %v383, 16
        %v424 = vpop.permute.xlu0 %423
        %vm427 = vcmask 392448
        %428 = vst.msk [vmem:[#allocation3] sm:$0xff] %vm427, %v422
        %429 = vst.msk [vmem:[#allocation3 + $0x8] sm:$0xff] %vm427, %v424
        %v430 = vrot.slane %v378, 1
        %v431 = vrot.slane %v383, 1
        %v432 = vsel %vm273, %v430, %v431
        %v434 = vsel %vm273, %v431, 0.0
        %436 = vrot.lane.b32.xlu0 %v432, 32
        %v437 = vpop.permute.xlu0 %436
        %438 = vrot.lane.b32.xlu0 %v434, 32
        %v439 = vpop.permute.xlu0 %438
        %vm442 = vcmask 523648
        %443 = vst.msk [vmem:[#allocation3] sm:$0xff] %vm442, %v437
        %444 = vst.msk [vmem:[#allocation3 + $0x8] sm:$0xff] %vm442, %v439
        %vm445 = vcmask 1045504
        %v446 = vrot.slane %v378, 2
        %v447 = vrot.slane %v383, 2
        %v448 = vsel %vm445, %v446, %v447
        %v450 = vsel %vm445, %v447, 0.0
        %452 = vrot.lane.b32.xlu0 %v448, 48
        %v453 = vpop.permute.xlu0 %452
        %454 = vrot.lane.b32.xlu0 %v450, 48
        %v455 = vpop.permute.xlu0 %454
        %vm458 = vcmask 654848
        %459 = vst.msk [vmem:[#allocation3] sm:$0xff] %vm458, %v453
        %460 = vst.msk [vmem:[#allocation3 + $0x8] sm:$0xff] %vm458, %v455
        %461 = vrot.lane.b32.xlu0 %v402, 96
        %v462 = vpop.permute.xlu0 %461
        %463 = vrot.lane.b32.xlu0 %v404, 96
        %v464 = vpop.permute.xlu0 %463
        %v466 = vsel %vm254, 0.0, %v462
        %468 = vrot.lane.b32.xlu0 %v466, 80
        %v469 = vpop.permute.xlu0 %468
        %470 = vrot.lane.b32.xlu0 %v464, 80
        %v471 = vpop.permute.xlu0 %470
        %vm474 = vcmask 786048
        %475 = vst.msk [vmem:[#allocation3] sm:$0xff] %vm474, %v469
        %476 = vst.msk [vmem:[#allocation3 + $0x8] sm:$0xff] %vm474, %v471
        %477 = vrot.lane.b32.xlu0 %v378, 64
        %v478 = vpop.permute.xlu0 %477
        %479 = vrot.lane.b32.xlu0 %v383, 64
        %v480 = vpop.permute.xlu0 %479
        %vm483 = vcmask 917248
        %484 = vst.msk [vmem:[#allocation3] sm:$0xff] %vm483, %v478
        %485 = vst.msk [vmem:[#allocation3 + $0x8] sm:$0xff] %vm483, %v480
        %486 = vrot.lane.b32.xlu0 %v432, 80
        %v487 = vpop.permute.xlu0 %486
        %488 = vrot.lane.b32.xlu0 %v434, 80
        %v489 = vpop.permute.xlu0 %488
        %vm492 = vcmask 1048448
        %493 = vst.msk [vmem:[#allocation3] sm:$0xff] %vm492, %v487
        %494 = vst.msk [vmem:[#allocation3 + $0x8] sm:$0xff] %vm492, %v489
        %v495 = vld [vmem:[#allocation3] sm:$0xff]
        %v496 = vld [vmem:[#allocation3 + $0x8] sm:$0xff]
        %v497 = vld [vmem:[%s3] sm:$0xff]
        %v498 = vld [vmem:[%s3 + $0x8] sm:$0xff]
        %v499 = vld [vmem:[%s3 + $0x10] sm:$0xff]
        %v500 = vld [vmem:[%s3 + $0x18] sm:$0xff]
        %v501 = vld [vmem:[%s3 + $0x20] sm:$0xff]
        %v502 = vld [vmem:[%s3 + $0x28] sm:$0xff]
        %v503 = vld [vmem:[%s3 + $0x30] sm:$0xff]
        %v504 = vld [vmem:[%s3 + $0x38] sm:$0xff]
        %v505 = vld [vmem:[%s3 + $0x40] sm:$0xff]
        %v506 = vld [vmem:[%s3 + $0x48] sm:$0xff]
        %v507 = vld [vmem:[%s3 + $0x50] sm:$0xff]
        %v508 = vld [vmem:[%s3 + $0x58] sm:$0xff]
        %v509 = vld [vmem:[%s3 + $0x60] sm:$0xff]
        %v510 = vld [vmem:[%s3 + $0x68] sm:$0xff]
        %v511 = vld [vmem:[%s3 + $0x70] sm:$0xff]
        %v512 = vld [vmem:[%s3 + $0x78] sm:$0xff]
        %v513 = vld [vmem:[%s5] sm:$0x1]
        %v515 = vlaneseq
        %v516 = vshrl.u32 %v515, 7
        %v517 = vsub.s32 0, %v516
        %v518 = vrot.slane %v513, %v517
        %520 = vmatprep.subr.mxu0 0.0
        %521 = vmatpush1.msra.mxu0 %v497
        %522 = vmatprep.subr.mxu0 0.0
        %523 = vmatpush1.msra.mxu0 %v498
        %524 = vmatprep.subr.mxu0 0.0
        %525 = vmatpush1.msra.mxu0 %v499
        %526 = vmatprep.subr.mxu0 0.0
        %527 = vmatpush1.msra.mxu0 %v500
        %528 = vmatprep.subr.mxu0 0.0
        %529 = vmatpush1.msra.mxu0 %v501
        %530 = vmatprep.subr.mxu0 0.0
        %531 = vmatpush1.msra.mxu0 %v502
        %532 = vmatprep.subr.mxu0 0.0
        %533 = vmatpush1.msra.mxu0 %v503
        %534 = vmatprep.subr.mxu0 0.0
        %535 = vmatpush1.msra.mxu0 %v504
        %536 = vmatprep.subr.mxu0 0.0
        %537 = vmatpush1.msra.mxu0 %v505
        %538 = vmatprep.subr.mxu0 0.0
        %539 = vmatpush1.msra.mxu0 %v506
        %540 = vmatprep.subr.mxu0 0.0
        %541 = vmatpush1.msra.mxu0 %v507
        %542 = vmatprep.subr.mxu0 0.0
        %543 = vmatpush1.msra.mxu0 %v508
        %544 = vmatprep.subr.mxu0 0.0
        %545 = vmatpush1.msra.mxu0 %v509
        %546 = vmatprep.subr.mxu0 0.0
        %547 = vmatpush1.msra.mxu0 %v510
        %548 = vmatprep.subr.mxu0 0.0
        %549 = vmatpush1.msra.mxu0 %v511
        %550 = vmatprep.subr.mxu0 0.0
        %551 = vmatpush1.msra.mxu0 %v512
        %552 = vmatprep.subr.mxu0 0.0
        %553 = vmatpush1.msra.mxu0 0.0
        %554 = vmatprep.subr.mxu0 0.0
        %555 = vmatpush1.msra.mxu0 0.0
        %556 = vmatprep.subr.mxu0 0.0
        %557 = vmatpush1.msra.mxu0 0.0
        %558 = vmatprep.subr.mxu0 0.0
        %559 = vmatpush1.msra.mxu0 0.0
        %560 = vmatprep.subr.mxu0 0.0
        %561 = vmatpush1.msra.mxu0 0.0
        %562 = vmatprep.subr.mxu0 0.0
        %563 = vmatpush1.msra.mxu0 0.0
        %564 = vmatprep.subr.mxu0 0.0
        %565 = vmatpush1.msra.mxu0 0.0
        %566 = vmatprep.subr.mxu0 0.0
        %567 = vmatpush1.msra.mxu0 0.0
        %568 = vmatprep.subr.mxu0 0.0
        %569 = vmatpush1.msra.mxu0 0.0
        %570 = vmatprep.subr.mxu0 0.0
        %571 = vmatpush1.msra.mxu0 0.0
        %572 = vmatprep.subr.mxu0 0.0
        %573 = vmatpush1.msra.mxu0 0.0
        %574 = vmatprep.subr.mxu0 0.0
        %575 = vmatpush1.msra.mxu0 0.0
        %576 = vmatprep.subr.mxu0 0.0
        %577 = vmatpush1.msra.mxu0 0.0
        %578 = vmatprep.subr.mxu0 0.0
        %579 = vmatpush1.msra.mxu0 0.0
        %580 = vmatprep.subr.mxu0 0.0
        %581 = vmatpush1.msra.mxu0 0.0
        %582 = vmatprep.subr.mxu0 0.0
        %583 = vmatpush1.msra.mxu0 0.0
        %584 = vmatprep.mubr.f32.mxu0 0.0
        %585 = vmatmul.mubr.f32.gmra.mrb[0].mxu0 %v495
        %v586 = vpop.f32.mrb[0].mxu0
        %v587 = vadd.f32 %v518, %v586
        %v588 = vpop.f32.mrb[0].mxu0
        %589 = vmatprep.mubr.f32.mxu0 0.0
        %590 = vmatmul.mubr.f32.gmra.mrb[0].mxu0 %v496
        %v591 = vpop.f32.mrb[0].mxu0
        %v592 = vadd.f32 %v518, %v591
        %v593 = vpop.f32.mrb[0].mxu0
        %594 = vdwg.mxu0
        %v597 = vrot.slane %v587, 7
        %v598 = vrot.slane %v592, 7
        %v599 = vsel %vm254, %v597, %v598
        %600 = vrot.lane.b32.xlu0 %v597, 104
        %v601 = vpop.permute.xlu0 %600
        %602 = vrot.lane.b32.xlu0 %v599, 104
        %v603 = vpop.permute.xlu0 %602
        %v606 = vsel %vm254, 0.0, %v601
        %vm607 = vcmask 195584
        %608 = vst.msk [vmem:[#allocation4] sm:$0xff] %vm607, %v606
        %609 = vst.msk [vmem:[#allocation4 + $0x8] sm:$0xff] %vm607, %v603
        %vm610 = vcmask 392384
        %611 = vst.msk [vmem:[#allocation4] sm:$0xff] %vm610, %v587
        %612 = vst.msk [vmem:[#allocation4 + $0x8] sm:$0xff] %vm610, %v592
        %v613 = vrot.slane %v587, 1
        %v614 = vrot.slane %v592, 1
        %v615 = vsel %vm273, %v613, %v614
        %v617 = vsel %vm273, %v614, 0.0
        %619 = vrot.lane.b32.xlu0 %v615, 24
        %v620 = vpop.permute.xlu0 %619
        %621 = vrot.lane.b32.xlu0 %v617, 24
        %v622 = vpop.permute.xlu0 %621
        %vm625 = vcmask 589184
        %626 = vst.msk [vmem:[#allocation4] sm:$0xff] %vm625, %v620
        %627 = vst.msk [vmem:[#allocation4 + $0x8] sm:$0xff] %vm625, %v622
        %v628 = vld [vmem:[#allocation4] sm:$0xff]
        %v629 = vld [vmem:[#allocation4 + $0x8] sm:$0xff]
        %v630 = vld [vmem:[%s4] sm:$0xff]
        %v631 = vld [vmem:[%s4 + $0x8] sm:$0xff]
        %v632 = vld [vmem:[%s4 + $0x10] sm:$0xff]
        %v633 = vld [vmem:[%s4 + $0x18] sm:$0xff]
        %v634 = vld [vmem:[%s4 + $0x20] sm:$0xff]
        %v635 = vld [vmem:[%s4 + $0x28] sm:$0xff]
        %v636 = vld [vmem:[%s4 + $0x30] sm:$0xff]
        %v637 = vld [vmem:[%s4 + $0x38] sm:$0xff]
        %v638 = vld [vmem:[%s4 + $0x40] sm:$0xff]
        %v639 = vld [vmem:[%s5] sm:$0x1]
        %v641 = vlaneseq
        %v642 = vshrl.u32 %v641, 7
        %v643 = vsub.s32 0, %v642
        %v644 = vrot.slane %v639, %v643
        %645 = vrot.lane.b32.xlu0 %v644, 80
        %v646 = vpop.permute.xlu0 %645
        %vm648 = vcmask 588800
        %v650 = vsel %vm648, %v628, 0
        %v653 = vsel %vm648, %v629, 0
        %655 = vmatprep.subr.mxu0 0.0
        %656 = vmatpush1.msra.mxu0 %v630
        %657 = vmatprep.subr.mxu0 0.0
        %658 = vmatpush1.msra.mxu0 %v631
        %659 = vmatprep.subr.mxu0 0.0
        %660 = vmatpush1.msra.mxu0 %v632
        %661 = vmatprep.subr.mxu0 0.0
        %662 = vmatpush1.msra.mxu0 %v633
        %663 = vmatprep.subr.mxu0 0.0
        %664 = vmatpush1.msra.mxu0 %v634
        %665 = vmatprep.subr.mxu0 0.0
        %666 = vmatpush1.msra.mxu0 %v635
        %667 = vmatprep.subr.mxu0 0.0
        %668 = vmatpush1.msra.mxu0 %v636
        %669 = vmatprep.subr.mxu0 0.0
        %670 = vmatpush1.msra.mxu0 %v637
        %671 = vmatprep.subr.mxu0 0.0
        %672 = vmatpush1.msra.mxu0 %v638
        %673 = vmatprep.subr.mxu0 0.0
        %674 = vmatpush1.msra.mxu0 0.0
        %675 = vmatprep.subr.mxu0 0.0
        %676 = vmatpush1.msra.mxu0 0.0
        %677 = vmatprep.subr.mxu0 0.0
        %678 = vmatpush1.msra.mxu0 0.0
        %679 = vmatprep.subr.mxu0 0.0
        %680 = vmatpush1.msra.mxu0 0.0
        %681 = vmatprep.subr.mxu0 0.0
        %682 = vmatpush1.msra.mxu0 0.0
        %683 = vmatprep.subr.mxu0 0.0
        %684 = vmatpush1.msra.mxu0 0.0
        %685 = vmatprep.subr.mxu0 0.0
        %686 = vmatpush1.msra.mxu0 0.0
        %687 = vmatprep.subr.mxu0 0.0
        %688 = vmatpush1.msra.mxu0 0.0
        %689 = vmatprep.subr.mxu0 0.0
        %690 = vmatpush1.msra.mxu0 0.0
        %691 = vmatprep.subr.mxu0 0.0
        %692 = vmatpush1.msra.mxu0 0.0
        %693 = vmatprep.subr.mxu0 0.0
        %694 = vmatpush1.msra.mxu0 0.0
        %695 = vmatprep.subr.mxu0 0.0
        %696 = vmatpush1.msra.mxu0 0.0
        %697 = vmatprep.subr.mxu0 0.0
        %698 = vmatpush1.msra.mxu0 0.0
        %699 = vmatprep.subr.mxu0 0.0
        %700 = vmatpush1.msra.mxu0 0.0
        %701 = vmatprep.subr.mxu0 0.0
        %702 = vmatpush1.msra.mxu0 0.0
        %703 = vmatprep.subr.mxu0 0.0
        %704 = vmatpush1.msra.mxu0 0.0
        %705 = vmatprep.subr.mxu0 0.0
        %706 = vmatpush1.msra.mxu0 0.0
        %707 = vmatprep.subr.mxu0 0.0
        %708 = vmatpush1.msra.mxu0 0.0
        %709 = vmatprep.subr.mxu0 0.0
        %710 = vmatpush1.msra.mxu0 0.0
        %711 = vmatprep.subr.mxu0 0.0
        %712 = vmatpush1.msra.mxu0 0.0
        %713 = vmatprep.subr.mxu0 0.0
        %714 = vmatpush1.msra.mxu0 0.0
        %715 = vmatprep.subr.mxu0 0.0
        %716 = vmatpush1.msra.mxu0 0.0
        %717 = vmatprep.subr.mxu0 0.0
        %718 = vmatpush1.msra.mxu0 0.0
        %719 = vmatprep.mubr.f32.mxu0 0.0
        %720 = vmatmul.mubr.f32.gmra.mrb[0].mxu0 %v650
        %v721 = vpop.f32.mrb[0].mxu0
        %v722 = vadd.f32 %v646, %v721
        %v723 = vpop.f32.mrb[0].mxu0
        %724 = vmatprep.mubr.f32.mxu0 0.0
        %725 = vmatmul.mubr.f32.gmra.mrb[0].mxu0 %v653
        %v726 = vpop.f32.mrb[0].mxu0
        %v727 = vadd.f32 %v646, %v726
        %v728 = vpop.f32.mrb[0].mxu0
        %729 = vdwg.mxu0
        %730 = vrot.lane.b32.xlu0 %v587, 16
        %v731 = vpop.permute.xlu0 %730
        %732 = vrot.lane.b32.xlu0 %v592, 16
        %v733 = vpop.permute.xlu0 %732
        %738 = vrot.lane.b32.xlu0 %v722, 40
        %v739 = vpop.permute.xlu0 %738
        %740 = vrot.lane.b32.xlu0 %v727, 40
        %v741 = vpop.permute.xlu0 %740
        %v744 = vsel %vm399, %v378, %v731
        %v745 = vsel %vm399, %v383, %v733
        %vm746 = vcmask 326656
        %v747 = vsel %vm746, %v744, %v739
        %v748 = vsel %vm746, %v745, %v741
        %vm749 = vcmask 523264
        %v750 = vsel %vm749, %v747, %v422
        %v751 = vsel %vm749, %v748, %v424
        %vm752 = vcmask 719872
        %753 = vst.msk [vmem:[%s244] sm:$0xff] %vm752, %v750
        %754 = vst.msk [vmem:[%s244 + $0x8] sm:$0xff] %vm752, %v751
        %s755 = sand.u32 %s159, 1
        %s756 = scalar_lea.sflag [#allocation6], %s755
        %s757 = sand.u32 %s159, 1
        %s758 = smul.addr %s757, 16
        %s759 = scalar_lea.vmem [#allocation5], %s758
        // Predicated region
        $region45: #{inception_a_forward.1} parent=43 // pred_check
          %p760 = pneg %p169
        $region46: #{inception_a_forward.1} parent=43 // pred_check_branch
          %762 = sbr.rel (%p760) target = $region48
        $region47: #{inception_a_forward.1} parent=43 // pred_region
          %s764 = ssub.s32 256, 256
          %765 = vsyncadd %s756, %s764
          %s766 = smul.addr %s20, 2
          %s767 = smul.addr %s766, 128
          %s768 = scalar_lea.hbm %s6, %s767
          %s769 = sshll.u32 %s759, 4
          %s770 = int_to_ptr.vmem [resolvable:$true] %s769
          %775 = dma.vmem_to_hbm [thread:$0]  %s770, 256, %s768, %s756, 128, 128, 8
        $region48: #{inception_a_forward.1} parent=43 // pred_fallthru
          _
      $region44: #{inception_a_forward.1} parent=5 // pred_fallthru
        _
      %p776 = scmp.le.s32.totalorder 2, %s15
      // Predicated region
      $region49: #{inception_a_forward.1} parent=5 // pred_check
        %p777 = pneg %p776
      $region50: #{inception_a_forward.1} parent=5 // pred_check_branch
        %779 = sbr.rel (%p777) target = $region52
      $region51: #{inception_a_forward.1} parent=5 // pred_region
        %s780 = ssub.s32 %s15, 2
        // Predicated region
        $region53: #{inception_a_forward.1} parent=51 // pred_check
          %p781 = pneg %p175
        $region54: #{inception_a_forward.1} parent=51 // pred_check_branch
          %783 = sbr.rel (%p781) target = $region56
        $region55: #{inception_a_forward.1} parent=51 // pred_region
          %s784 = sand.u32 %s160, 1
          %s785 = scalar_lea.sflag [#allocation6], %s784
          %s786 = sand.u32 %s160, 1
          %s787 = smul.addr %s786, 16
          %s788 = scalar_lea.vmem [#allocation5], %s787
          %789 = dma.done %s785, 256
        $region56: #{inception_a_forward.1} parent=51 // pred_fallthru
          _
      $region52: #{inception_a_forward.1} parent=5 // pred_fallthru
        _
    $region6: #{inception_a_forward.1} parent=1 // loop_footer
      %s19 = sadd.s32 1, %s15
    $region7: #{inception_a_forward.1} parent=1 // loop_footer_branch
      %14 = sbr.rel target = $region3
    $region8: #{inception_a_forward.1} parent=1 // loop_exit
      _
    %790 = vsyncpa [#allocation6], 1
    %s791 = scalar_lea.sflag [#allocation6], 1
    %792 = vsyncpa %s791, 1

</llo_original>
